<compile_context>
chip_gen: v7x
topology: tpu7x:2x2x1
jax: 0.10.0
libtpu: 0.0.40
codegen_flags: <defaults>
</compile_context>

<pallas_src>
import functools

import jax
import jax.numpy as jnp
from jax.experimental import pallas as pl
from jax.experimental.pallas import tpu as pltpu


def _apply_activation(h, name):
    if name == "tanh":
        return jnp.tanh(h)
    if name == "sigmoid":
        return jax.nn.sigmoid(h)
    if name == "leaky_relu":
        return jnp.where(h >= 0, h, 0.01 * h)
    # 'relu' and any unknown / None name fall back to ReLU,
    # matching activation_functions.get(act, nn.ReLU()).
    return jnp.maximum(h, 0.0)


def _round_up(n, m):
    return ((n + m - 1) // m) * m


def _normalize_activations(activation_name, n_hidden):
    if not isinstance(activation_name, (list, tuple)):
        activation_name = [activation_name] * n_hidden
    return tuple(activation_name)


def _tpu_kind():
    try:
        return jax.devices()[0].device_kind.lower()
    except Exception:
        return ""


def _use_bf16_activations():
    kind = _tpu_kind()
    # v5e has no bf16 VPU/EUP; keep activations in f32 there.
    return ("v6" in kind) or ("v7" in kind)


def _vmem_limit_bytes():
    kind = _tpu_kind()
    is_v7 = "v7" in kind
    # v7x: 64 MiB physical VMEM -> stay well under it. v5e/v6e: 128 MiB physical
    # (v5e's scoped default is only 16 MiB, so raise it explicitly).
    return (48 if is_v7 else 96) << 20


def _pick_tile_b(requested, B, D, widths, out_dim, weight_bytes, budget_bytes):
    # Per-batch-row VMEM cost: double-buffered f32 x block + double-buffered f32
    # out block + roughly two live activation tensors (f32 + bf16) at the
    # widest layer.
    per_row = 2 * 4 * D + 2 * 4 * out_dim + 6 * max([D] + list(widths))
    avail = max(budget_bytes - weight_bytes, 1 << 20)
    cap = max(8, (avail // per_row) // 8 * 8)
    tile = min(_round_up(max(requested, 8), 8), cap, _round_up(B, 8))
    return max(8, (tile // 8) * 8)


def _mlp_kernel(*refs, n_layers, activations, last_is_reduce, act_in_bf16):
    # refs = (x_ref, w0, b0, w1, b1, ..., w_{L-1}, b_{L-1}, out_ref)
    x_ref = refs[0]
    out_ref = refs[-1]
    p = refs[1:-1]

    h = x_ref[...]  # f32 tile [TILE_B, D]
    for li in range(n_layers):
        w_ref = p[2 * li]
        b_ref = p[2 * li + 1]
        last = li == n_layers - 1
        feeds_reduce = last_is_reduce and (li == n_layers - 2)
        if last and last_is_reduce:
            # Final Linear(hidden, 1): an N=1 matmul wastes the MXU; do a VPU
            # multiply + XLU lane reduction (w_ref pre-transposed to [1, hidden],
            # kept in f32 since it never feeds the MXU).
            w_row = w_ref[...]
            h = jnp.sum(h.astype(jnp.float32) * w_row, axis=-1,
                        keepdims=True) + b_ref[...]
        else:
            acc = jnp.dot(h.astype(jnp.bfloat16), w_ref[...],
                          preferred_element_type=jnp.float32) + b_ref[...]
            if last:
                h = acc
            elif feeds_reduce:
                # Next layer is the VPU reduce (no MXU): skip the bf16 downcast.
                h = _apply_activation(acc, activations[li])
            elif act_in_bf16:
                # bf16 VPU/EUP path (v6e/v7x): activation in bf16, stays bf16
                # for the next MXU matmul.
                h = _apply_activation(acc.astype(jnp.bfloat16), activations[li])
            else:
                # v5e: f32 activation, then bf16 for the next MXU matmul.
                h = _apply_activation(acc, activations[li]).astype(jnp.bfloat16)
    out_ref[...] = h.astype(out_ref.dtype)


def binary_classifier_forward(x, params, activation_name=None, *, tile_b=2048):
    """x: [B, input_size]; params: list of (W [in, out], b [1, out])."""
    B, D = x.shape
    n_layers = len(params)
    activations = _normalize_activations(activation_name, n_layers - 1)
    if len(activations) < n_layers - 1:
        raise ValueError("need one activation name per hidden layer")

    out_dim = params[-1][0].shape[1]  # == 1 for BinaryClassifier
    last_is_reduce = out_dim == 1
    act_in_bf16 = _use_bf16_activations()

    # Read the f32 x stream directly (no wrapper-side cast/pad pass).
    if x.dtype != jnp.float32:
        x = x.astype(jnp.float32)

    # Flat weight/bias args (tiny, cast once; in production pre-convert these).
    flat = []
    for li, (w, b) in enumerate(params):
        if li == n_layers - 1 and last_is_reduce:
            w_arg = w.astype(jnp.float32).T  # [1, hidden] row for the VPU reduce
        else:
            w_arg = w.astype(jnp.bfloat16)
        flat += [w_arg, b.astype(jnp.float32)]

    vmem_limit = _vmem_limit_bytes()
    weight_bytes = 2 * sum(int(a.size) * a.dtype.itemsize for a in flat)
    widths = [w.shape[1] for w, _ in params]
    tile_b = _pick_tile_b(tile_b, B, D, widths, out_dim, weight_bytes,
                          int(vmem_limit * 0.75))

    grid = (pl.cdiv(B, tile_b),)  # ragged last block; no padding pass

    flops = 2 * B * sum(w.shape[0] * w.shape[1] for w, _ in params)
    transc = B * sum(
        params[i][0].shape[1] for i in range(n_layers - 1)
        if activations[i] in ("tanh", "sigmoid"))
    bytes_accessed = (int(x.size) * 4
                      + sum(int(a.size) * a.dtype.itemsize for a in flat)
                      + B * out_dim * 4)

    kernel = functools.partial(
        _mlp_kernel, n_layers=n_layers, activations=activations,
        last_is_reduce=last_is_reduce, act_in_bf16=act_in_bf16)

    def run(single_buffer_weights):
        in_specs = [pl.BlockSpec((tile_b, D), lambda i: (i, 0))]
        for a in flat:
            if single_buffer_weights:
                # Constant index_map -> resident; single buffer halves the VMEM
                # reserved for parameters.
                spec = pl.BlockSpec(a.shape, lambda i: (0, 0),
                                    pipeline_mode=pl.Buffered(1))
            else:
                spec = pl.BlockSpec(a.shape, lambda i: (0, 0))
            in_specs.append(spec)
        return pl.pallas_call(
            kernel,
            out_shape=jax.ShapeDtypeStruct((B, out_dim), jnp.float32),
            grid=grid,
            in_specs=in_specs,
            out_specs=pl.BlockSpec((tile_b, out_dim), lambda i: (i, 0)),
            compiler_params=pltpu.CompilerParams(
                dimension_semantics=("parallel",),
                vmem_limit_bytes=vmem_limit),
            cost_estimate=pl.CostEstimate(
                flops=int(flops), transcendentals=int(transc),
                bytes_accessed=int(bytes_accessed)),
        )(x, *flat)

    try:
        return run(single_buffer_weights=True)
    except Exception:
        # pl.Buffered(1) not supported by this jax version -> default specs.
        return run(single_buffer_weights=False)


def init_params(key, input_size, hidden_sizes):
    """Deterministic init. Biases filled with 0.01 (matches _initialize_biases)."""
    sizes = [input_size] + list(hidden_sizes) + [1]
    params = []
    for i in range(len(sizes) - 1):
        key, sub = jax.random.split(key)
        fan_in, fan_out = sizes[i], sizes[i + 1]
        bound = 1.0 / jnp.sqrt(jnp.float32(fan_in))
        w = jax.random.uniform(
            sub, (fan_in, fan_out), jnp.float32, minval=-bound, maxval=bound)
        b = jnp.full((1, fan_out), 0.01, dtype=jnp.float32)
        params.append((w, b))
    return params


def reference_forward(x, params, activations, act_in_bf16):
    """Pure-JAX reference mirroring the kernel's dtype path exactly."""
    n = len(params)
    last_is_reduce = params[-1][0].shape[1] == 1
    h = x.astype(jnp.float32)
    for li, (w, b) in enumerate(params):
        last = li == n - 1
        feeds_reduce = last_is_reduce and (li == n - 2)
        if last and last_is_reduce:
            w_row = w.astype(jnp.float32).T
            h = jnp.sum(h.astype(jnp.float32) * w_row, axis=-1,
                        keepdims=True) + b
        else:
            acc = jnp.dot(h.astype(jnp.bfloat16), w.astype(jnp.bfloat16),
                          preferred_element_type=jnp.float32) + b
            if last:
                h = acc
            elif feeds_reduce:
                h = _apply_activation(acc, activations[li])
            elif act_in_bf16:
                h = _apply_activation(acc.astype(jnp.bfloat16), activations[li])
            else:
                h = _apply_activation(acc, activations[li]).astype(jnp.bfloat16)
    return h.astype(jnp.float32)


if __name__ == "__main__":
    key = jax.random.PRNGKey(0)
    batch = 8
    input_size = 32
    hidden_sizes = [64, 32]
    activations = ["relu", "tanh"]  # per-hidden-layer activation names

    kx, kp = jax.random.split(key)
    x = jax.random.normal(kx, (batch, input_size), dtype=jnp.float32)
    params = init_params(kp, input_size, hidden_sizes)

    out = binary_classifier_forward(x, params, activations)
    out = jax.block_until_ready(out)

    ref = reference_forward(x, params, tuple(activations),
                            _use_bf16_activations())
    assert out.shape == (batch, 1), out.shape
    assert jnp.allclose(out, ref, atol=5e-3, rtol=5e-3), (out, ref)

    print("KERNEL_OK")
</pallas_src>

<mosaic_0001>
module attributes {stable_mosaic.version = 11 : i64} {
  func.func @_mlp_kernel(%arg0: i32, %arg1: memref<8x32xf32, #tpu.memory_space<vmem>>, %arg2: memref<32x64xbf16, #tpu.memory_space<vmem>>, %arg3: memref<1x64xf32, #tpu.memory_space<vmem>>, %arg4: memref<64x32xbf16, #tpu.memory_space<vmem>>, %arg5: memref<1x32xf32, #tpu.memory_space<vmem>>, %arg6: memref<1x32xf32, #tpu.memory_space<vmem>>, %arg7: memref<1x1xf32, #tpu.memory_space<vmem>>, %arg8: memref<8x1xf32, #tpu.memory_space<vmem>>) attributes {dimension_semantics = [#tpu.dimension_semantics<parallel>], iteration_bounds = array<i64: 1>, scalar_prefetch = 0 : i64, scratch_operands = 0 : i64, tpu.core_type = #tpu.core_type<tc>, window_params = [{transform_indices = @transform_0, window_bounds = array<i64: 8, 32>}, {pipeline_mode = #tpu.pipeline_mode<synchronous>, transform_indices = @transform_1, window_bounds = array<i64: 32, 64>}, {pipeline_mode = #tpu.pipeline_mode<synchronous>, transform_indices = @transform_2, window_bounds = array<i64: 1, 64>}, {pipeline_mode = #tpu.pipeline_mode<synchronous>, transform_indices = @transform_3, window_bounds = array<i64: 64, 32>}, {pipeline_mode = #tpu.pipeline_mode<synchronous>, transform_indices = @transform_4, window_bounds = array<i64: 1, 32>}, {pipeline_mode = #tpu.pipeline_mode<synchronous>, transform_indices = @transform_5, window_bounds = array<i64: 1, 32>}, {pipeline_mode = #tpu.pipeline_mode<synchronous>, transform_indices = @transform_6, window_bounds = array<i64: 1, 1>}, {transform_indices = @transform_7, window_bounds = array<i64: 8, 1>}]} {
    %c0 = arith.constant 0 : index
    %c0_0 = arith.constant 0 : index
    %0 = vector.load %arg1[%c0, %c0_0] : memref<8x32xf32, #tpu.memory_space<vmem>>, vector<8x32xf32>
    %1 = arith.truncf %0 : vector<8x32xf32> to vector<8x32xbf16>
    %c0_1 = arith.constant 0 : index
    %c0_2 = arith.constant 0 : index
    %2 = vector.load %arg2[%c0_1, %c0_2] : memref<32x64xbf16, #tpu.memory_space<vmem>>, vector<32x64xbf16>
    %cst = arith.constant dense<0.000000e+00> : vector<8x64xf32>
    %3 = tpu.matmul %1, %2, %cst {dimension_numbers = #tpu.dot_dimension_numbers<[1], [0], [0], [1], [0, 0, 1, 1], [], []>} : vector<8x32xbf16>, vector<32x64xbf16>, vector<8x64xf32> -> vector<8x64xf32>
    %c0_3 = arith.constant 0 : index
    %c0_4 = arith.constant 0 : index
    %4 = vector.load %arg3[%c0_3, %c0_4] : memref<1x64xf32, #tpu.memory_space<vmem>>, vector<1x64xf32>
    %5 = vector.broadcast %4 : vector<1x64xf32> to vector<8x64xf32>
    %6 = arith.addf %3, %5 : vector<8x64xf32>
    %cst_5 = arith.constant 0.000000e+00 : f32
    %7 = vector.broadcast %cst_5 : f32 to vector<8x64xf32>
    %8 = arith.maximumf %6, %7 : vector<8x64xf32>
    %9 = arith.truncf %8 : vector<8x64xf32> to vector<8x64xbf16>
    %c0_6 = arith.constant 0 : index
    %c0_7 = arith.constant 0 : index
    %10 = vector.load %arg4[%c0_6, %c0_7] : memref<64x32xbf16, #tpu.memory_space<vmem>>, vector<64x32xbf16>
    %cst_8 = arith.constant dense<0.000000e+00> : vector<8x32xf32>
    %11 = tpu.matmul %9, %10, %cst_8 {dimension_numbers = #tpu.dot_dimension_numbers<[1], [0], [0], [1], [0, 0, 1, 1], [], []>} : vector<8x64xbf16>, vector<64x32xbf16>, vector<8x32xf32> -> vector<8x32xf32>
    %c0_9 = arith.constant 0 : index
    %c0_10 = arith.constant 0 : index
    %12 = vector.load %arg5[%c0_9, %c0_10] : memref<1x32xf32, #tpu.memory_space<vmem>>, vector<1x32xf32>
    %13 = vector.broadcast %12 : vector<1x32xf32> to vector<8x32xf32>
    %14 = arith.addf %11, %13 : vector<8x32xf32>
    %15 = math.tanh %14 : vector<8x32xf32>
    %c0_11 = arith.constant 0 : index
    %c0_12 = arith.constant 0 : index
    %16 = vector.load %arg6[%c0_11, %c0_12] : memref<1x32xf32, #tpu.memory_space<vmem>>, vector<1x32xf32>
    %17 = vector.broadcast %16 : vector<1x32xf32> to vector<8x32xf32>
    %18 = arith.mulf %15, %17 : vector<8x32xf32>
    %cst_13 = arith.constant dense<0.000000e+00> : vector<8xf32>
    %19 = vector.multi_reduction <add>, %18, %cst_13 [1] : vector<8x32xf32> to vector<8xf32>
    %20 = vector.shape_cast %19 : vector<8xf32> to vector<8x1xf32>
    %c0_14 = arith.constant 0 : index
    %c0_15 = arith.constant 0 : index
    %21 = vector.load %arg7[%c0_14, %c0_15] : memref<1x1xf32, #tpu.memory_space<vmem>>, vector<1x1xf32>
    %22 = vector.broadcast %21 : vector<1x1xf32> to vector<8x1xf32>
    %23 = arith.addf %20, %22 : vector<8x1xf32>
    %c0_16 = arith.constant 0 : index
    %c0_17 = arith.constant 0 : index
    %24 = vector.load %arg8[%c0_16, %c0_17] : memref<8x1xf32, #tpu.memory_space<vmem>>, vector<8x1xf32>
    tpu.vector_store %arg8[%c0_16, %c0_17], %23 {strides = array<i32>} : memref<8x1xf32, #tpu.memory_space<vmem>>, vector<8x1xf32>,
    return
  }
  func.func @transform_0(%arg0: i32) -> (i32, i32) {
    %c0_i32 = arith.constant 0 : i32
    %c0_i32_0 = arith.constant 0 : i32
    return %arg0, %c0_i32 : i32, i32
  }
  func.func @transform_1(%arg0: i32) -> (i32, i32) {
    %c0_i32 = arith.constant 0 : i32
    %c0_i32_0 = arith.constant 0 : i32
    %c0_i32_1 = arith.constant 0 : i32
    return %c0_i32, %c0_i32_0 : i32, i32
  }
  func.func @transform_2(%arg0: i32) -> (i32, i32) {
    %c0_i32 = arith.constant 0 : i32
    %c0_i32_0 = arith.constant 0 : i32
    %c0_i32_1 = arith.constant 0 : i32
    return %c0_i32, %c0_i32_0 : i32, i32
  }
  func.func @transform_3(%arg0: i32) -> (i32, i32) {
    %c0_i32 = arith.constant 0 : i32
    %c0_i32_0 = arith.constant 0 : i32
    %c0_i32_1 = arith.constant 0 : i32
    return %c0_i32, %c0_i32_0 : i32, i32
  }
  func.func @transform_4(%arg0: i32) -> (i32, i32) {
    %c0_i32 = arith.constant 0 : i32
    %c0_i32_0 = arith.constant 0 : i32
    %c0_i32_1 = arith.constant 0 : i32
    return %c0_i32, %c0_i32_0 : i32, i32
  }
  func.func @transform_5(%arg0: i32) -> (i32, i32) {
    %c0_i32 = arith.constant 0 : i32
    %c0_i32_0 = arith.constant 0 : i32
    %c0_i32_1 = arith.constant 0 : i32
    return %c0_i32, %c0_i32_0 : i32, i32
  }
  func.func @transform_6(%arg0: i32) -> (i32, i32) {
    %c0_i32 = arith.constant 0 : i32
    %c0_i32_0 = arith.constant 0 : i32
    %c0_i32_1 = arith.constant 0 : i32
    return %c0_i32, %c0_i32_0 : i32, i32
  }
  func.func @transform_7(%arg0: i32) -> (i32, i32) {
    %c0_i32 = arith.constant 0 : i32
    %c0_i32_0 = arith.constant 0 : i32
    return %arg0, %c0_i32 : i32, i32
  }
}

module attributes {stable_mosaic.version = 11 : i64} {
  func.func @_mlp_kernel(%arg0: i32, %arg1: memref<8x32xf32, #tpu.memory_space<vmem>>, %arg2: memref<32x64xbf16, #tpu.memory_space<vmem>>, %arg3: memref<1x64xf32, #tpu.memory_space<vmem>>, %arg4: memref<64x32xbf16, #tpu.memory_space<vmem>>, %arg5: memref<1x32xf32, #tpu.memory_space<vmem>>, %arg6: memref<1x32xf32, #tpu.memory_space<vmem>>, %arg7: memref<1x1xf32, #tpu.memory_space<vmem>>, %arg8: memref<8x1xf32, #tpu.memory_space<vmem>>) attributes {dimension_semantics = [#tpu.dimension_semantics<parallel>], iteration_bounds = array<i64: 1>, scalar_prefetch = 0 : i64, scratch_operands = 0 : i64, tpu.core_type = #tpu.core_type<tc>, window_params = [{transform_indices = @transform_0, window_bounds = array<i64: 8, 32>}, {pipeline_mode = #tpu.pipeline_mode<synchronous>, transform_indices = @transform_1, window_bounds = array<i64: 32, 64>}, {pipeline_mode = #tpu.pipeline_mode<synchronous>, transform_indices = @transform_2, window_bounds = array<i64: 1, 64>}, {pipeline_mode = #tpu.pipeline_mode<synchronous>, transform_indices = @transform_3, window_bounds = array<i64: 64, 32>}, {pipeline_mode = #tpu.pipeline_mode<synchronous>, transform_indices = @transform_4, window_bounds = array<i64: 1, 32>}, {pipeline_mode = #tpu.pipeline_mode<synchronous>, transform_indices = @transform_5, window_bounds = array<i64: 1, 32>}, {pipeline_mode = #tpu.pipeline_mode<synchronous>, transform_indices = @transform_6, window_bounds = array<i64: 1, 1>}, {transform_indices = @transform_7, window_bounds = array<i64: 8, 1>}]} {
    %c0 = arith.constant 0 : index
    %c0_0 = arith.constant 0 : index
    %0 = vector.load %arg1[%c0, %c0_0] : memref<8x32xf32, #tpu.memory_space<vmem>>, vector<8x32xf32>
    %1 = arith.truncf %0 : vector<8x32xf32> to vector<8x32xbf16>
    %c0_1 = arith.constant 0 : index
    %c0_2 = arith.constant 0 : index
    %2 = vector.load %arg2[%c0_1, %c0_2] : memref<32x64xbf16, #tpu.memory_space<vmem>>, vector<32x64xbf16>
    %cst = arith.constant dense<0.000000e+00> : vector<8x64xf32>
    %3 = tpu.matmul %1, %2, %cst {dimension_numbers = #tpu.dot_dimension_numbers<[1], [0], [0], [1], [0, 0, 1, 1], [], []>} : vector<8x32xbf16>, vector<32x64xbf16>, vector<8x64xf32> -> vector<8x64xf32>
    %c0_3 = arith.constant 0 : index
    %c0_4 = arith.constant 0 : index
    %4 = vector.load %arg3[%c0_3, %c0_4] : memref<1x64xf32, #tpu.memory_space<vmem>>, vector<1x64xf32>
    %5 = vector.broadcast %4 : vector<1x64xf32> to vector<8x64xf32>
    %6 = arith.addf %3, %5 : vector<8x64xf32>
    %cst_5 = arith.constant 0.000000e+00 : f32
    %7 = vector.broadcast %cst_5 : f32 to vector<8x64xf32>
    %8 = arith.maximumf %6, %7 : vector<8x64xf32>
    %9 = arith.truncf %8 : vector<8x64xf32> to vector<8x64xbf16>
    %c0_6 = arith.constant 0 : index
    %c0_7 = arith.constant 0 : index
    %10 = vector.load %arg4[%c0_6, %c0_7] : memref<64x32xbf16, #tpu.memory_space<vmem>>, vector<64x32xbf16>
    %cst_8 = arith.constant dense<0.000000e+00> : vector<8x32xf32>
    %11 = tpu.matmul %9, %10, %cst_8 {dimension_numbers = #tpu.dot_dimension_numbers<[1], [0], [0], [1], [0, 0, 1, 1], [], []>} : vector<8x64xbf16>, vector<64x32xbf16>, vector<8x32xf32> -> vector<8x32xf32>
    %c0_9 = arith.constant 0 : index
    %c0_10 = arith.constant 0 : index
    %12 = vector.load %arg5[%c0_9, %c0_10] : memref<1x32xf32, #tpu.memory_space<vmem>>, vector<1x32xf32>
    %13 = vector.broadcast %12 : vector<1x32xf32> to vector<8x32xf32>
    %14 = arith.addf %11, %13 : vector<8x32xf32>
    %15 = math.tanh %14 : vector<8x32xf32>
    %c0_11 = arith.constant 0 : index
    %c0_12 = arith.constant 0 : index
    %16 = vector.load %arg6[%c0_11, %c0_12] : memref<1x32xf32, #tpu.memory_space<vmem>>, vector<1x32xf32>
    %17 = vector.broadcast %16 : vector<1x32xf32> to vector<8x32xf32>
    %18 = arith.mulf %15, %17 : vector<8x32xf32>
    %cst_13 = arith.constant dense<0.000000e+00> : vector<8xf32>
    %19 = vector.multi_reduction <add>, %18, %cst_13 [1] : vector<8x32xf32> to vector<8xf32>
    %20 = vector.shape_cast %19 : vector<8xf32> to vector<8x1xf32>
    %c0_14 = arith.constant 0 : index
    %c0_15 = arith.constant 0 : index
    %21 = vector.load %arg7[%c0_14, %c0_15] : memref<1x1xf32, #tpu.memory_space<vmem>>, vector<1x1xf32>
    %22 = vector.broadcast %21 : vector<1x1xf32> to vector<8x1xf32>
    %23 = arith.addf %20, %22 : vector<8x1xf32>
    %c0_16 = arith.constant 0 : index
    %c0_17 = arith.constant 0 : index
    %24 = vector.load %arg8[%c0_16, %c0_17] : memref<8x1xf32, #tpu.memory_space<vmem>>, vector<8x1xf32>
    tpu.vector_store %arg8[%c0_16, %c0_17], %23 {strides = array<i32>} : memref<8x1xf32, #tpu.memory_space<vmem>>, vector<8x1xf32>,
    return
  }
  func.func @transform_0(%arg0: i32) -> (i32, i32) {
    %c0_i32 = arith.constant 0 : i32
    %c0_i32_0 = arith.constant 0 : i32
    return %arg0, %c0_i32 : i32, i32
  }
  func.func @transform_1(%arg0: i32) -> (i32, i32) {
    %c0_i32 = arith.constant 0 : i32
    %c0_i32_0 = arith.constant 0 : i32
    %c0_i32_1 = arith.constant 0 : i32
    return %c0_i32, %c0_i32_0 : i32, i32
  }
  func.func @transform_2(%arg0: i32) -> (i32, i32) {
    %c0_i32 = arith.constant 0 : i32
    %c0_i32_0 = arith.constant 0 : i32
    %c0_i32_1 = arith.constant 0 : i32
    return %c0_i32, %c0_i32_0 : i32, i32
  }
  func.func @transform_3(%arg0: i32) -> (i32, i32) {
    %c0_i32 = arith.constant 0 : i32
    %c0_i32_0 = arith.constant 0 : i32
    %c0_i32_1 = arith.constant 0 : i32
    return %c0_i32, %c0_i32_0 : i32, i32
  }
  func.func @transform_4(%arg0: i32) -> (i32, i32) {
    %c0_i32 = arith.constant 0 : i32
    %c0_i32_0 = arith.constant 0 : i32
    %c0_i32_1 = arith.constant 0 : i32
    return %c0_i32, %c0_i32_0 : i32, i32
  }
  func.func @transform_5(%arg0: i32) -> (i32, i32) {
    %c0_i32 = arith.constant 0 : i32
    %c0_i32_0 = arith.constant 0 : i32
    %c0_i32_1 = arith.constant 0 : i32
    return %c0_i32, %c0_i32_0 : i32, i32
  }
  func.func @transform_6(%arg0: i32) -> (i32, i32) {
    %c0_i32 = arith.constant 0 : i32
    %c0_i32_0 = arith.constant 0 : i32
    %c0_i32_1 = arith.constant 0 : i32
    return %c0_i32, %c0_i32_0 : i32, i32
  }
  func.func @transform_7(%arg0: i32) -> (i32, i32) {
    %c0_i32 = arith.constant 0 : i32
    %c0_i32_0 = arith.constant 0 : i32
    return %arg0, %c0_i32 : i32, i32
  }
}

</mosaic_0001>

<llo_original>
// kernel: tpu_custom_call.1
$region0: #{tpu_custom_call.1}
  #allocation0 [shape = 'u32[]', space=smem, size = 0x4, offset = 0x4, fixed_abs, tag = 'smem constant byte address 0x4 - core index']
  #allocation1 [shape = 'u32[144,128]{1,0:T(1,128)}', space=vmem, size = 0x12000, scoped, tag = 'internal scratch']
  #allocation2 [shape = 'f32[1,1]{1,0:T(1,128)S(1)}', space=vmem, size = 0x200, scoped, tag = 'scoped memory for tpu_custom_call.1']
  %s0 = inlined_call_operand.hbm [shape: f32[8,32], index: 0, kind: input, shape index: {}]
  %s1 = inlined_call_operand.hbm [shape: bf16[32,64], index: 1, kind: input, shape index: {}]
  %s2 = inlined_call_operand.hbm [shape: f32[1,64], index: 2, kind: input, shape index: {}]
  %s3 = inlined_call_operand.hbm [shape: bf16[64,32], index: 3, kind: input, shape index: {}]
  %s4 = inlined_call_operand.hbm [shape: f32[1,32], index: 4, kind: input, shape index: {}]
  %s5 = inlined_call_operand.hbm [shape: f32[1,32], index: 5, kind: input, shape index: {}]
  %s6 = inlined_call_operand.<no memory space> [shape: f32[1,1], index: 6, kind: input, shape index: {}]
  %s7 = inlined_call_operand.hbm [shape: f32[8,1], index: 7, kind: output, shape index: {}]
  %s8 = sld [smem:[#allocation0]]
  $region62: #{tpu_custom_call.1} parent=0
    _
  %s10 = ssub.s32 1, %s8
  %s11 = scalar_select 0, %s10, %s8
  %v12 = vstv %s6
  %13 = vst [vmem:[#allocation2] sm:$0x1] %v12
  $region1: #{tpu_custom_call.1} parent=0
    #allocation3 [shape = 'u8[4096]{0}', space=vmem, size = 0x1000, scoped, tag = 'input window, operand 0, single buffered']
    #allocation4 [shape = 's32[1]{0}', space=sflag, size = 0x4, scoped, tag = 'scoped memory for tpu_custom_call.1']
    #allocation5 [shape = 's32[1]{0}', space=sflag, size = 0x4, scoped, tag = 'scoped memory for tpu_custom_call.1']
    #allocation6 [shape = 'u8[8192]{0}', space=vmem, size = 0x2000, scoped, tag = 'input window, operand 1, single buffered']
    #allocation7 [shape = 's32[1]{0}', space=sflag, size = 0x4, scoped, tag = 'scoped memory for tpu_custom_call.1']
    #allocation8 [shape = 'u8[512]{0}', space=vmem, size = 0x400, scoped, tag = 'input window, operand 2, single buffered']
    #allocation9 [shape = 'u8[16384]{0}', space=vmem, size = 0x4000, scoped, tag = 'input window, operand 3, single buffered']
    #allocation10 [shape = 's32[1]{0}', space=sflag, size = 0x4, scoped, tag = 'scoped memory for tpu_custom_call.1']
    #allocation11 [shape = 'u8[512]{0}', space=vmem, size = 0x400, scoped, tag = 'input window, operand 4, single buffered']
    #allocation12 [shape = 'u8[512]{0}', space=vmem, size = 0x400, scoped, tag = 'input window, operand 5, single buffered']
    #allocation13 [shape = 's32[1]{0}', space=sflag, size = 0x4, scoped, tag = 'scoped memory for tpu_custom_call.1']
    #allocation14 [shape = 'u8[4096]{0}', space=vmem, size = 0x1000, scoped, tag = 'output window, operand 0, single buffered']
    %14 = vsyncpa [#allocation4], 0
    %15 = vsyncpa [#allocation7], 0
    %16 = vsyncpa [#allocation10], 0
    %17 = vsyncpa [#allocation13], 0
    %18 = vsyncpa [#allocation5], 0
    // Predicated region
    $region2: #{tpu_custom_call.1} parent=1 // pred_check
      _
    $region3: #{tpu_custom_call.1} parent=1 // pred_check_branch
      %20 = sbr.rel (0) target = $region5
    $region4: #{tpu_custom_call.1} parent=1 // pred_region
      %s22 = ssub.s32 128, 128
      %23 = vsyncadd [#allocation4], %s22
      %s25 = sshll.u32 [#allocation3], 4
      %s26 = int_to_ptr.vmem [resolvable:$true] %s25
      %28 = dma.hbm_to_vmem [thread:$0]  %s0, 128, %s26, [#allocation4]
    $region5: #{tpu_custom_call.1} parent=1 // pred_fallthru
      _
    // Predicated region
    $region6: #{tpu_custom_call.1} parent=1 // pred_check
      _
    $region7: #{tpu_custom_call.1} parent=1 // pred_check_branch
      %30 = sbr.rel (0) target = $region9
    $region8: #{tpu_custom_call.1} parent=1 // pred_region
      %s32 = ssub.s32 256, 256
      %33 = vsyncadd [#allocation7], %s32
      %s34 = sshll.u32 [#allocation6], 4
      %s35 = int_to_ptr.vmem [resolvable:$true] %s34
      %40 = dma.hbm_to_vmem [thread:$0]  %s1, 256, %s35, [#allocation7], 64, 64, 4
    $region9: #{tpu_custom_call.1} parent=1 // pred_fallthru
      _
    // Predicated region
    $region10: #{tpu_custom_call.1} parent=1 // pred_check
      _
    $region11: #{tpu_custom_call.1} parent=1 // pred_check_branch
      %42 = sbr.rel (0) target = $region13
    $region12: #{tpu_custom_call.1} parent=1 // pred_region
      %s44 = ssub.s32 16, 16
      %45 = vsyncadd [#allocation7], %s44
      %s47 = sshll.u32 [#allocation8], 4
      %s48 = int_to_ptr.vmem [resolvable:$true] %s47
      %50 = dma.hbm_to_vmem [thread:$0]  %s2, 16, %s48, [#allocation7]
    $region13: #{tpu_custom_call.1} parent=1 // pred_fallthru
      _
    // Predicated region
    $region14: #{tpu_custom_call.1} parent=1 // pred_check
      _
    $region15: #{tpu_custom_call.1} parent=1 // pred_check_branch
      %52 = sbr.rel (0) target = $region17
    $region16: #{tpu_custom_call.1} parent=1 // pred_region
      %s54 = ssub.s32 512, 512
      %55 = vsyncadd [#allocation10], %s54
      %s56 = sshll.u32 [#allocation9], 4
      %s57 = int_to_ptr.vmem [resolvable:$true] %s56
      %62 = dma.hbm_to_vmem [thread:$0]  %s3, 512, %s57, [#allocation10], 64, 64, 4
    $region17: #{tpu_custom_call.1} parent=1 // pred_fallthru
      _
    // Predicated region
    $region18: #{tpu_custom_call.1} parent=1 // pred_check
      _
    $region19: #{tpu_custom_call.1} parent=1 // pred_check_branch
      %64 = sbr.rel (0) target = $region21
    $region20: #{tpu_custom_call.1} parent=1 // pred_region
      %s66 = ssub.s32 16, 16
      %67 = vsyncadd [#allocation10], %s66
      %s69 = sshll.u32 [#allocation11], 4
      %s70 = int_to_ptr.vmem [resolvable:$true] %s69
      %72 = dma.hbm_to_vmem [thread:$0]  %s4, 16, %s70, [#allocation10]
    $region21: #{tpu_custom_call.1} parent=1 // pred_fallthru
      _
    // Predicated region
    $region22: #{tpu_custom_call.1} parent=1 // pred_check
      _
    $region23: #{tpu_custom_call.1} parent=1 // pred_check_branch
      %74 = sbr.rel (0) target = $region25
    $region24: #{tpu_custom_call.1} parent=1 // pred_region
      %s76 = ssub.s32 16, 16
      %77 = vsyncadd [#allocation13], %s76
      %s79 = sshll.u32 [#allocation12], 4
      %s80 = int_to_ptr.vmem [resolvable:$true] %s79
      %82 = dma.hbm_to_vmem [thread:$0]  %s5, 16, %s80, [#allocation13]
    $region25: #{tpu_custom_call.1} parent=1 // pred_fallthru
      _
    // Predicated region
    $region26: #{tpu_custom_call.1} parent=1 // pred_check
      _
    $region27: #{tpu_custom_call.1} parent=1 // pred_check_branch
      %84 = sbr.rel (0) target = $region29
    $region28: #{tpu_custom_call.1} parent=1 // pred_region
      _
    $region29: #{tpu_custom_call.1} parent=1 // pred_fallthru
      _
    // Predicated region
    $region30: #{tpu_custom_call.1} parent=1 // pred_check
      _
    $region31: #{tpu_custom_call.1} parent=1 // pred_check_branch
      %86 = sbr.rel (0) target = $region33
    $region32: #{tpu_custom_call.1} parent=1 // pred_region
      %87 = dma.done [#allocation4], 128
    $region33: #{tpu_custom_call.1} parent=1 // pred_fallthru
      _
    // Predicated region
    $region34: #{tpu_custom_call.1} parent=1 // pred_check
      _
    $region35: #{tpu_custom_call.1} parent=1 // pred_check_branch
      %89 = sbr.rel (0) target = $region37
    $region36: #{tpu_custom_call.1} parent=1 // pred_region
      %90 = dma.done [#allocation7], 256
    $region37: #{tpu_custom_call.1} parent=1 // pred_fallthru
      _
    // Predicated region
    $region38: #{tpu_custom_call.1} parent=1 // pred_check
      _
    $region39: #{tpu_custom_call.1} parent=1 // pred_check_branch
      %92 = sbr.rel (0) target = $region41
    $region40: #{tpu_custom_call.1} parent=1 // pred_region
      %93 = dma.done [#allocation7], 16
    $region41: #{tpu_custom_call.1} parent=1 // pred_fallthru
      _
    // Predicated region
    $region42: #{tpu_custom_call.1} parent=1 // pred_check
      _
    $region43: #{tpu_custom_call.1} parent=1 // pred_check_branch
      %95 = sbr.rel (0) target = $region45
    $region44: #{tpu_custom_call.1} parent=1 // pred_region
      %96 = dma.done [#allocation10], 512
    $region45: #{tpu_custom_call.1} parent=1 // pred_fallthru
      _
    // Predicated region
    $region46: #{tpu_custom_call.1} parent=1 // pred_check
      _
    $region47: #{tpu_custom_call.1} parent=1 // pred_check_branch
      %98 = sbr.rel (0) target = $region49
    $region48: #{tpu_custom_call.1} parent=1 // pred_region
      %99 = dma.done [#allocation10], 16
    $region49: #{tpu_custom_call.1} parent=1 // pred_fallthru
      _
    // Predicated region
    $region50: #{tpu_custom_call.1} parent=1 // pred_check
      _
    $region51: #{tpu_custom_call.1} parent=1 // pred_check_branch
      %101 = sbr.rel (0) target = $region53
    $region52: #{tpu_custom_call.1} parent=1 // pred_region
      %102 = dma.done [#allocation13], 16
    $region53: #{tpu_custom_call.1} parent=1 // pred_fallthru
      _
    %v104 = vld [vmem:[#allocation3] sm:$0xff]
    %v105 = vpack.c.bf16 %v104, %v104
    %v106 = vld [vmem:[#allocation6] sm:$0xf]
    %v107 = vld [vmem:[#allocation6 + $0x4] sm:$0xf]
    %v108 = vld [vmem:[#allocation6 + $0x8] sm:$0xf]
    %v109 = vld [vmem:[#allocation6 + $0xc] sm:$0xf]
    %v110 = vld [vmem:[#allocation8] sm:$0x1]
    %v112 = vlaneseq
    %v113 = vshrl.u32 %v112, 7
    %v114 = vsub.s32 0, %v113
    %v115 = vrot.slane %v110, %v114
    %v121 = vunpack.c.l.b16 %v106
    %v122 = vunpack.c.l.b16 %v107
    %v123 = vunpack.c.l.b16 %v108
    %v124 = vunpack.c.l.b16 %v109
    %v125 = vpack.c.b16 %v122, %v121
    %v126 = vpack.c.b16 %v124, %v123
    %vm129 = vcmask 261120
    %v131 = vsel %vm129, %v105, 0
    %133 = vmatprep.subr.bf16.mxu0 0
    %134 = vmatpush1.bf16.msra.mxu0 %v125
    %135 = vmatprep.subr.bf16.mxu0 0
    %136 = vmatpush1.bf16.msra.mxu0 %v126
    %137 = vmatprep.subr.bf16.mxu0 0
    %138 = vmatpush1.bf16.msra.mxu0 0
    %139 = vmatprep.subr.bf16.mxu0 0
    %140 = vmatpush1.bf16.msra.mxu0 0
    %141 = vmatprep.subr.bf16.mxu0 0
    %142 = vmatpush1.bf16.msra.mxu0 0
    %143 = vmatprep.subr.bf16.mxu0 0
    %144 = vmatpush1.bf16.msra.mxu0 0
    %145 = vmatprep.subr.bf16.mxu0 0
    %146 = vmatpush1.bf16.msra.mxu0 0
    %147 = vmatprep.subr.bf16.mxu0 0
    %148 = vmatpush1.bf16.msra.mxu0 0
    %149 = vmatprep.subr.bf16.mxu0 0
    %150 = vmatpush1.bf16.msra.mxu0 0
    %151 = vmatprep.subr.bf16.mxu0 0
    %152 = vmatpush1.bf16.msra.mxu0 0
    %153 = vmatprep.subr.bf16.mxu0 0
    %154 = vmatpush1.bf16.msra.mxu0 0
    %155 = vmatprep.subr.bf16.mxu0 0
    %156 = vmatpush1.bf16.msra.mxu0 0
    %157 = vmatprep.subr.bf16.mxu0 0
    %158 = vmatpush1.bf16.msra.mxu0 0
    %159 = vmatprep.subr.bf16.mxu0 0
    %160 = vmatpush1.bf16.msra.mxu0 0
    %161 = vmatprep.subr.bf16.mxu0 0
    %162 = vmatpush1.bf16.msra.mxu0 0
    %163 = vmatprep.subr.bf16.mxu0 0
    %164 = vmatpush1.bf16.msra.mxu0 0
    %165 = vmatprep.mubr.bf16.mxu0 0
    %166 = vmatmul.mubr.bf16.gmra.mrb[0].mxu0 %v131
    %v167 = vpop.f32.mrb[0].mxu0
    %v168 = vadd.f32 %v115, %v167
    %v169 = vpop.f32.mrb[0].mxu0
    %v170 = vpop.f32.mrb[0].mxu0
    %v171 = vpop.f32.mrb[0].mxu0
    %172 = vdwg.mxu0
    %v173 = vmax.f32 %v168, 0.0
    %v174 = vpack.c.bf16 %v173, %v173
    %v175 = vld [vmem:[#allocation9] sm:$0xf]
    %v176 = vld [vmem:[#allocation9 + $0x4] sm:$0xf]
    %v177 = vld [vmem:[#allocation9 + $0x8] sm:$0xf]
    %v178 = vld [vmem:[#allocation9 + $0xc] sm:$0xf]
    %v179 = vld [vmem:[#allocation9 + $0x10] sm:$0xf]
    %v180 = vld [vmem:[#allocation9 + $0x14] sm:$0xf]
    %v181 = vld [vmem:[#allocation9 + $0x18] sm:$0xf]
    %v182 = vld [vmem:[#allocation9 + $0x1c] sm:$0xf]
    %v183 = vld [vmem:[#allocation11] sm:$0x1]
    %v185 = vlaneseq
    %v186 = vshrl.u32 %v185, 7
    %v187 = vsub.s32 0, %v186
    %v188 = vrot.slane %v183, %v187
    %v198 = vunpack.c.l.b16 %v175
    %v199 = vunpack.c.l.b16 %v176
    %v200 = vunpack.c.l.b16 %v177
    %v201 = vunpack.c.l.b16 %v178
    %v202 = vunpack.c.l.b16 %v179
    %v203 = vunpack.c.l.b16 %v180
    %v204 = vunpack.c.l.b16 %v181
    %v205 = vunpack.c.l.b16 %v182
    %v206 = vpack.c.b16 %v199, %v198
    %v207 = vpack.c.b16 %v201, %v200
    %v208 = vpack.c.b16 %v203, %v202
    %v209 = vpack.c.b16 %v205, %v204
    %vm214 = vcmask 523264
    %v216 = vsel %vm214, %v174, 0
    %218 = vmatprep.subr.bf16.mxu0 0
    %219 = vmatpush1.bf16.msra.mxu0 %v206
    %220 = vmatprep.subr.bf16.mxu0 0
    %221 = vmatpush1.bf16.msra.mxu0 %v207
    %222 = vmatprep.subr.bf16.mxu0 0
    %223 = vmatpush1.bf16.msra.mxu0 %v208
    %224 = vmatprep.subr.bf16.mxu0 0
    %225 = vmatpush1.bf16.msra.mxu0 %v209
    %226 = vmatprep.subr.bf16.mxu0 0
    %227 = vmatpush1.bf16.msra.mxu0 0
    %228 = vmatprep.subr.bf16.mxu0 0
    %229 = vmatpush1.bf16.msra.mxu0 0
    %230 = vmatprep.subr.bf16.mxu0 0
    %231 = vmatpush1.bf16.msra.mxu0 0
    %232 = vmatprep.subr.bf16.mxu0 0
    %233 = vmatpush1.bf16.msra.mxu0 0
    %234 = vmatprep.subr.bf16.mxu0 0
    %235 = vmatpush1.bf16.msra.mxu0 0
    %236 = vmatprep.subr.bf16.mxu0 0
    %237 = vmatpush1.bf16.msra.mxu0 0
    %238 = vmatprep.subr.bf16.mxu0 0
    %239 = vmatpush1.bf16.msra.mxu0 0
    %240 = vmatprep.subr.bf16.mxu0 0
    %241 = vmatpush1.bf16.msra.mxu0 0
    %242 = vmatprep.subr.bf16.mxu0 0
    %243 = vmatpush1.bf16.msra.mxu0 0
    %244 = vmatprep.subr.bf16.mxu0 0
    %245 = vmatpush1.bf16.msra.mxu0 0
    %246 = vmatprep.subr.bf16.mxu0 0
    %247 = vmatpush1.bf16.msra.mxu0 0
    %248 = vmatprep.subr.bf16.mxu0 0
    %249 = vmatpush1.bf16.msra.mxu0 0
    %250 = vmatprep.mubr.bf16.mxu0 0
    %251 = vmatmul.mubr.bf16.gmra.mrb[0].mxu0 %v216
    %v252 = vpop.f32.mrb[0].mxu0
    %v253 = vadd.f32 %v188, %v252
    %v254 = vpop.f32.mrb[0].mxu0
    %v255 = vpop.f32.mrb[0].mxu0
    %v256 = vpop.f32.mrb[0].mxu0
    %257 = vdwg.mxu0
    %v258 = vtanh.pop %v253
    %v259 = vld [vmem:[#allocation12] sm:$0x1]
    %v261 = vlaneseq
    %v262 = vshrl.u32 %v261, 7
    %v263 = vsub.s32 0, %v262
    %v264 = vrot.slane %v259, %v263
    %v266 = vmul.f32 %v258, %v264
    %v267 = vsel %vm129, %v266, 0.0
    %268 = vadd.xlane.f32.xlu0 %v267
    %v269 = vpop.xlane.xlu0 %268
    %v270 = vld [vmem:[#allocation2] sm:$0x1]
    %v272 = vlaneseq
    %v273 = vshrl.u32 %v272, 7
    %v274 = vsub.s32 0, %v273
    %v275 = vrot.slane %v270, %v274
    %v277 = vadd.f32 %v269, %v275
    %vm278 = vcmask 7168
    %279 = vst.msk [vmem:[#allocation14] sm:$0xff] %vm278, %v277
    // Predicated region
    $region54: #{tpu_custom_call.1} parent=1 // pred_check
      _
    $region55: #{tpu_custom_call.1} parent=1 // pred_check_branch
      %281 = sbr.rel (0) target = $region57
    $region56: #{tpu_custom_call.1} parent=1 // pred_region
      %s283 = ssub.s32 128, 128
      %284 = vsyncadd [#allocation5], %s283
      %s286 = sshll.u32 [#allocation14], 4
      %s287 = int_to_ptr.vmem [resolvable:$true] %s286
      %289 = dma.vmem_to_hbm [thread:$0]  %s287, 128, %s7, [#allocation5]
    $region57: #{tpu_custom_call.1} parent=1 // pred_fallthru
      _
    // Predicated region
    $region58: #{tpu_custom_call.1} parent=1 // pred_check
      _
    $region59: #{tpu_custom_call.1} parent=1 // pred_check_branch
      %291 = sbr.rel (0) target = $region61
    $region60: #{tpu_custom_call.1} parent=1 // pred_region
      %292 = dma.done [#allocation5], 128
    $region61: #{tpu_custom_call.1} parent=1 // pred_fallthru
      _
    %293 = vsyncpa [#allocation4], 1
    %294 = vsyncpa [#allocation7], 1
    %295 = vsyncpa [#allocation10], 1
    %296 = vsyncpa [#allocation13], 1
    %297 = vsyncpa [#allocation5], 1

// kernel: tpu_custom_call.1
$region0: #{tpu_custom_call.1}
  #allocation0 [shape = 'u32[]', space=smem, size = 0x4, offset = 0x4, fixed_abs, tag = 'smem constant byte address 0x4 - core index']
  #allocation1 [shape = 'u32[144,128]{1,0:T(1,128)}', space=vmem, size = 0x12000, scoped, tag = 'internal scratch']
  #allocation2 [shape = 'f32[1,1]{1,0:T(1,128)S(1)}', space=vmem, size = 0x200, scoped, tag = 'scoped memory for tpu_custom_call.1']
  %s0 = inlined_call_operand.hbm [shape: f32[8,32], index: 0, kind: input, shape index: {}]
  %s1 = inlined_call_operand.hbm [shape: bf16[32,64], index: 1, kind: input, shape index: {}]
  %s2 = inlined_call_operand.hbm [shape: f32[1,64], index: 2, kind: input, shape index: {}]
  %s3 = inlined_call_operand.hbm [shape: bf16[64,32], index: 3, kind: input, shape index: {}]
  %s4 = inlined_call_operand.hbm [shape: f32[1,32], index: 4, kind: input, shape index: {}]
  %s5 = inlined_call_operand.hbm [shape: f32[1,32], index: 5, kind: input, shape index: {}]
  %s6 = inlined_call_operand.<no memory space> [shape: f32[1,1], index: 6, kind: input, shape index: {}]
  %s7 = inlined_call_operand.hbm [shape: f32[8,1], index: 7, kind: output, shape index: {}]
  %s8 = sld [smem:[#allocation0]]
  $region62: #{tpu_custom_call.1} parent=0
    _
  %s10 = ssub.s32 1, %s8
  %s11 = scalar_select 0, %s10, %s8
  %v12 = vstv %s6
  %13 = vst [vmem:[#allocation2] sm:$0x1] %v12
  $region1: #{tpu_custom_call.1} parent=0
    #allocation3 [shape = 'u8[4096]{0}', space=vmem, size = 0x1000, scoped, tag = 'input window, operand 0, single buffered']
    #allocation4 [shape = 's32[1]{0}', space=sflag, size = 0x4, scoped, tag = 'scoped memory for tpu_custom_call.1']
    #allocation5 [shape = 's32[1]{0}', space=sflag, size = 0x4, scoped, tag = 'scoped memory for tpu_custom_call.1']
    #allocation6 [shape = 'u8[8192]{0}', space=vmem, size = 0x2000, scoped, tag = 'input window, operand 1, single buffered']
    #allocation7 [shape = 's32[1]{0}', space=sflag, size = 0x4, scoped, tag = 'scoped memory for tpu_custom_call.1']
    #allocation8 [shape = 'u8[512]{0}', space=vmem, size = 0x400, scoped, tag = 'input window, operand 2, single buffered']
    #allocation9 [shape = 'u8[16384]{0}', space=vmem, size = 0x4000, scoped, tag = 'input window, operand 3, single buffered']
    #allocation10 [shape = 's32[1]{0}', space=sflag, size = 0x4, scoped, tag = 'scoped memory for tpu_custom_call.1']
    #allocation11 [shape = 'u8[512]{0}', space=vmem, size = 0x400, scoped, tag = 'input window, operand 4, single buffered']
    #allocation12 [shape = 'u8[512]{0}', space=vmem, size = 0x400, scoped, tag = 'input window, operand 5, single buffered']
    #allocation13 [shape = 's32[1]{0}', space=sflag, size = 0x4, scoped, tag = 'scoped memory for tpu_custom_call.1']
    #allocation14 [shape = 'u8[4096]{0}', space=vmem, size = 0x1000, scoped, tag = 'output window, operand 0, single buffered']
    %14 = vsyncpa [#allocation4], 0
    %15 = vsyncpa [#allocation7], 0
    %16 = vsyncpa [#allocation10], 0
    %17 = vsyncpa [#allocation13], 0
    %18 = vsyncpa [#allocation5], 0
    // Predicated region
    $region2: #{tpu_custom_call.1} parent=1 // pred_check
      _
    $region3: #{tpu_custom_call.1} parent=1 // pred_check_branch
      %20 = sbr.rel (0) target = $region5
    $region4: #{tpu_custom_call.1} parent=1 // pred_region
      %s22 = ssub.s32 128, 128
      %23 = vsyncadd [#allocation4], %s22
      %s25 = sshll.u32 [#allocation3], 4
      %s26 = int_to_ptr.vmem [resolvable:$true] %s25
      %28 = dma.hbm_to_vmem [thread:$0]  %s0, 128, %s26, [#allocation4]
    $region5: #{tpu_custom_call.1} parent=1 // pred_fallthru
      _
    // Predicated region
    $region6: #{tpu_custom_call.1} parent=1 // pred_check
      _
    $region7: #{tpu_custom_call.1} parent=1 // pred_check_branch
      %30 = sbr.rel (0) target = $region9
    $region8: #{tpu_custom_call.1} parent=1 // pred_region
      %s32 = ssub.s32 256, 256
      %33 = vsyncadd [#allocation7], %s32
      %s34 = sshll.u32 [#allocation6], 4
      %s35 = int_to_ptr.vmem [resolvable:$true] %s34
      %40 = dma.hbm_to_vmem [thread:$0]  %s1, 256, %s35, [#allocation7], 64, 64, 4
    $region9: #{tpu_custom_call.1} parent=1 // pred_fallthru
      _
    // Predicated region
    $region10: #{tpu_custom_call.1} parent=1 // pred_check
      _
    $region11: #{tpu_custom_call.1} parent=1 // pred_check_branch
      %42 = sbr.rel (0) target = $region13
    $region12: #{tpu_custom_call.1} parent=1 // pred_region
      %s44 = ssub.s32 16, 16
      %45 = vsyncadd [#allocation7], %s44
      %s47 = sshll.u32 [#allocation8], 4
      %s48 = int_to_ptr.vmem [resolvable:$true] %s47
      %50 = dma.hbm_to_vmem [thread:$0]  %s2, 16, %s48, [#allocation7]
    $region13: #{tpu_custom_call.1} parent=1 // pred_fallthru
      _
    // Predicated region
    $region14: #{tpu_custom_call.1} parent=1 // pred_check
      _
    $region15: #{tpu_custom_call.1} parent=1 // pred_check_branch
      %52 = sbr.rel (0) target = $region17
    $region16: #{tpu_custom_call.1} parent=1 // pred_region
      %s54 = ssub.s32 512, 512
      %55 = vsyncadd [#allocation10], %s54
      %s56 = sshll.u32 [#allocation9], 4
      %s57 = int_to_ptr.vmem [resolvable:$true] %s56
      %62 = dma.hbm_to_vmem [thread:$0]  %s3, 512, %s57, [#allocation10], 64, 64, 4
    $region17: #{tpu_custom_call.1} parent=1 // pred_fallthru
      _
    // Predicated region
    $region18: #{tpu_custom_call.1} parent=1 // pred_check
      _
    $region19: #{tpu_custom_call.1} parent=1 // pred_check_branch
      %64 = sbr.rel (0) target = $region21
    $region20: #{tpu_custom_call.1} parent=1 // pred_region
      %s66 = ssub.s32 16, 16
      %67 = vsyncadd [#allocation10], %s66
      %s69 = sshll.u32 [#allocation11], 4
      %s70 = int_to_ptr.vmem [resolvable:$true] %s69
      %72 = dma.hbm_to_vmem [thread:$0]  %s4, 16, %s70, [#allocation10]
    $region21: #{tpu_custom_call.1} parent=1 // pred_fallthru
      _
    // Predicated region
    $region22: #{tpu_custom_call.1} parent=1 // pred_check
      _
    $region23: #{tpu_custom_call.1} parent=1 // pred_check_branch
      %74 = sbr.rel (0) target = $region25
    $region24: #{tpu_custom_call.1} parent=1 // pred_region
      %s76 = ssub.s32 16, 16
      %77 = vsyncadd [#allocation13], %s76
      %s79 = sshll.u32 [#allocation12], 4
      %s80 = int_to_ptr.vmem [resolvable:$true] %s79
      %82 = dma.hbm_to_vmem [thread:$0]  %s5, 16, %s80, [#allocation13]
    $region25: #{tpu_custom_call.1} parent=1 // pred_fallthru
      _
    // Predicated region
    $region26: #{tpu_custom_call.1} parent=1 // pred_check
      _
    $region27: #{tpu_custom_call.1} parent=1 // pred_check_branch
      %84 = sbr.rel (0) target = $region29
    $region28: #{tpu_custom_call.1} parent=1 // pred_region
      _
    $region29: #{tpu_custom_call.1} parent=1 // pred_fallthru
      _
    // Predicated region
    $region30: #{tpu_custom_call.1} parent=1 // pred_check
      _
    $region31: #{tpu_custom_call.1} parent=1 // pred_check_branch
      %86 = sbr.rel (0) target = $region33
    $region32: #{tpu_custom_call.1} parent=1 // pred_region
      %87 = dma.done [#allocation4], 128
    $region33: #{tpu_custom_call.1} parent=1 // pred_fallthru
      _
    // Predicated region
    $region34: #{tpu_custom_call.1} parent=1 // pred_check
      _
    $region35: #{tpu_custom_call.1} parent=1 // pred_check_branch
      %89 = sbr.rel (0) target = $region37
    $region36: #{tpu_custom_call.1} parent=1 // pred_region
      %90 = dma.done [#allocation7], 256
    $region37: #{tpu_custom_call.1} parent=1 // pred_fallthru
      _
    // Predicated region
    $region38: #{tpu_custom_call.1} parent=1 // pred_check
      _
    $region39: #{tpu_custom_call.1} parent=1 // pred_check_branch
      %92 = sbr.rel (0) target = $region41
    $region40: #{tpu_custom_call.1} parent=1 // pred_region
      %93 = dma.done [#allocation7], 16
    $region41: #{tpu_custom_call.1} parent=1 // pred_fallthru
      _
    // Predicated region
    $region42: #{tpu_custom_call.1} parent=1 // pred_check
      _
    $region43: #{tpu_custom_call.1} parent=1 // pred_check_branch
      %95 = sbr.rel (0) target = $region45
    $region44: #{tpu_custom_call.1} parent=1 // pred_region
      %96 = dma.done [#allocation10], 512
    $region45: #{tpu_custom_call.1} parent=1 // pred_fallthru
      _
    // Predicated region
    $region46: #{tpu_custom_call.1} parent=1 // pred_check
      _
    $region47: #{tpu_custom_call.1} parent=1 // pred_check_branch
      %98 = sbr.rel (0) target = $region49
    $region48: #{tpu_custom_call.1} parent=1 // pred_region
      %99 = dma.done [#allocation10], 16
    $region49: #{tpu_custom_call.1} parent=1 // pred_fallthru
      _
    // Predicated region
    $region50: #{tpu_custom_call.1} parent=1 // pred_check
      _
    $region51: #{tpu_custom_call.1} parent=1 // pred_check_branch
      %101 = sbr.rel (0) target = $region53
    $region52: #{tpu_custom_call.1} parent=1 // pred_region
      %102 = dma.done [#allocation13], 16
    $region53: #{tpu_custom_call.1} parent=1 // pred_fallthru
      _
    %v104 = vld [vmem:[#allocation3] sm:$0xff]
    %v105 = vpack.c.bf16 %v104, %v104
    %v106 = vld [vmem:[#allocation6] sm:$0xf]
    %v107 = vld [vmem:[#allocation6 + $0x4] sm:$0xf]
    %v108 = vld [vmem:[#allocation6 + $0x8] sm:$0xf]
    %v109 = vld [vmem:[#allocation6 + $0xc] sm:$0xf]
    %v110 = vld [vmem:[#allocation8] sm:$0x1]
    %v112 = vlaneseq
    %v113 = vshrl.u32 %v112, 7
    %v114 = vsub.s32 0, %v113
    %v115 = vrot.slane %v110, %v114
    %v121 = vunpack.c.l.b16 %v106
    %v122 = vunpack.c.l.b16 %v107
    %v123 = vunpack.c.l.b16 %v108
    %v124 = vunpack.c.l.b16 %v109
    %v125 = vpack.c.b16 %v122, %v121
    %v126 = vpack.c.b16 %v124, %v123
    %vm129 = vcmask 261120
    %v131 = vsel %vm129, %v105, 0
    %133 = vmatprep.subr.bf16.mxu0 0
    %134 = vmatpush1.bf16.msra.mxu0 %v125
    %135 = vmatprep.subr.bf16.mxu0 0
    %136 = vmatpush1.bf16.msra.mxu0 %v126
    %137 = vmatprep.subr.bf16.mxu0 0
    %138 = vmatpush1.bf16.msra.mxu0 0
    %139 = vmatprep.subr.bf16.mxu0 0
    %140 = vmatpush1.bf16.msra.mxu0 0
    %141 = vmatprep.subr.bf16.mxu0 0
    %142 = vmatpush1.bf16.msra.mxu0 0
    %143 = vmatprep.subr.bf16.mxu0 0
    %144 = vmatpush1.bf16.msra.mxu0 0
    %145 = vmatprep.subr.bf16.mxu0 0
    %146 = vmatpush1.bf16.msra.mxu0 0
    %147 = vmatprep.subr.bf16.mxu0 0
    %148 = vmatpush1.bf16.msra.mxu0 0
    %149 = vmatprep.subr.bf16.mxu0 0
    %150 = vmatpush1.bf16.msra.mxu0 0
    %151 = vmatprep.subr.bf16.mxu0 0
    %152 = vmatpush1.bf16.msra.mxu0 0
    %153 = vmatprep.subr.bf16.mxu0 0
    %154 = vmatpush1.bf16.msra.mxu0 0
    %155 = vmatprep.subr.bf16.mxu0 0
    %156 = vmatpush1.bf16.msra.mxu0 0
    %157 = vmatprep.subr.bf16.mxu0 0
    %158 = vmatpush1.bf16.msra.mxu0 0
    %159 = vmatprep.subr.bf16.mxu0 0
    %160 = vmatpush1.bf16.msra.mxu0 0
    %161 = vmatprep.subr.bf16.mxu0 0
    %162 = vmatpush1.bf16.msra.mxu0 0
    %163 = vmatprep.subr.bf16.mxu0 0
    %164 = vmatpush1.bf16.msra.mxu0 0
    %165 = vmatprep.mubr.bf16.mxu0 0
    %166 = vmatmul.mubr.bf16.gmra.mrb[0].mxu0 %v131
    %v167 = vpop.f32.mrb[0].mxu0
    %v168 = vadd.f32 %v115, %v167
    %v169 = vpop.f32.mrb[0].mxu0
    %v170 = vpop.f32.mrb[0].mxu0
    %v171 = vpop.f32.mrb[0].mxu0
    %172 = vdwg.mxu0
    %v173 = vmax.f32 %v168, 0.0
    %v174 = vpack.c.bf16 %v173, %v173
    %v175 = vld [vmem:[#allocation9] sm:$0xf]
    %v176 = vld [vmem:[#allocation9 + $0x4] sm:$0xf]
    %v177 = vld [vmem:[#allocation9 + $0x8] sm:$0xf]
    %v178 = vld [vmem:[#allocation9 + $0xc] sm:$0xf]
    %v179 = vld [vmem:[#allocation9 + $0x10] sm:$0xf]
    %v180 = vld [vmem:[#allocation9 + $0x14] sm:$0xf]
    %v181 = vld [vmem:[#allocation9 + $0x18] sm:$0xf]
    %v182 = vld [vmem:[#allocation9 + $0x1c] sm:$0xf]
    %v183 = vld [vmem:[#allocation11] sm:$0x1]
    %v185 = vlaneseq
    %v186 = vshrl.u32 %v185, 7
    %v187 = vsub.s32 0, %v186
    %v188 = vrot.slane %v183, %v187
    %v198 = vunpack.c.l.b16 %v175
    %v199 = vunpack.c.l.b16 %v176
    %v200 = vunpack.c.l.b16 %v177
    %v201 = vunpack.c.l.b16 %v178
    %v202 = vunpack.c.l.b16 %v179
    %v203 = vunpack.c.l.b16 %v180
    %v204 = vunpack.c.l.b16 %v181
    %v205 = vunpack.c.l.b16 %v182
    %v206 = vpack.c.b16 %v199, %v198
    %v207 = vpack.c.b16 %v201, %v200
    %v208 = vpack.c.b16 %v203, %v202
    %v209 = vpack.c.b16 %v205, %v204
    %vm214 = vcmask 523264
    %v216 = vsel %vm214, %v174, 0
    %218 = vmatprep.subr.bf16.mxu0 0
    %219 = vmatpush1.bf16.msra.mxu0 %v206
    %220 = vmatprep.subr.bf16.mxu0 0
    %221 = vmatpush1.bf16.msra.mxu0 %v207
    %222 = vmatprep.subr.bf16.mxu0 0
    %223 = vmatpush1.bf16.msra.mxu0 %v208
    %224 = vmatprep.subr.bf16.mxu0 0
    %225 = vmatpush1.bf16.msra.mxu0 %v209
    %226 = vmatprep.subr.bf16.mxu0 0
    %227 = vmatpush1.bf16.msra.mxu0 0
    %228 = vmatprep.subr.bf16.mxu0 0
    %229 = vmatpush1.bf16.msra.mxu0 0
    %230 = vmatprep.subr.bf16.mxu0 0
    %231 = vmatpush1.bf16.msra.mxu0 0
    %232 = vmatprep.subr.bf16.mxu0 0
    %233 = vmatpush1.bf16.msra.mxu0 0
    %234 = vmatprep.subr.bf16.mxu0 0
    %235 = vmatpush1.bf16.msra.mxu0 0
    %236 = vmatprep.subr.bf16.mxu0 0
    %237 = vmatpush1.bf16.msra.mxu0 0
    %238 = vmatprep.subr.bf16.mxu0 0
    %239 = vmatpush1.bf16.msra.mxu0 0
    %240 = vmatprep.subr.bf16.mxu0 0
    %241 = vmatpush1.bf16.msra.mxu0 0
    %242 = vmatprep.subr.bf16.mxu0 0
    %243 = vmatpush1.bf16.msra.mxu0 0
    %244 = vmatprep.subr.bf16.mxu0 0
    %245 = vmatpush1.bf16.msra.mxu0 0
    %246 = vmatprep.subr.bf16.mxu0 0
    %247 = vmatpush1.bf16.msra.mxu0 0
    %248 = vmatprep.subr.bf16.mxu0 0
    %249 = vmatpush1.bf16.msra.mxu0 0
    %250 = vmatprep.mubr.bf16.mxu0 0
    %251 = vmatmul.mubr.bf16.gmra.mrb[0].mxu0 %v216
    %v252 = vpop.f32.mrb[0].mxu0
    %v253 = vadd.f32 %v188, %v252
    %v254 = vpop.f32.mrb[0].mxu0
    %v255 = vpop.f32.mrb[0].mxu0
    %v256 = vpop.f32.mrb[0].mxu0
    %257 = vdwg.mxu0
    %v258 = vtanh.pop %v253
    %v259 = vld [vmem:[#allocation12] sm:$0x1]
    %v261 = vlaneseq
    %v262 = vshrl.u32 %v261, 7
    %v263 = vsub.s32 0, %v262
    %v264 = vrot.slane %v259, %v263
    %v266 = vmul.f32 %v258, %v264
    %v267 = vsel %vm129, %v266, 0.0
    %268 = vadd.xlane.f32.xlu0 %v267
    %v269 = vpop.xlane.xlu0 %268
    %v270 = vld [vmem:[#allocation2] sm:$0x1]
    %v272 = vlaneseq
    %v273 = vshrl.u32 %v272, 7
    %v274 = vsub.s32 0, %v273
    %v275 = vrot.slane %v270, %v274
    %v277 = vadd.f32 %v269, %v275
    %vm278 = vcmask 7168
    %279 = vst.msk [vmem:[#allocation14] sm:$0xff] %vm278, %v277
    // Predicated region
    $region54: #{tpu_custom_call.1} parent=1 // pred_check
      _
    $region55: #{tpu_custom_call.1} parent=1 // pred_check_branch
      %281 = sbr.rel (0) target = $region57
    $region56: #{tpu_custom_call.1} parent=1 // pred_region
      %s283 = ssub.s32 128, 128
      %284 = vsyncadd [#allocation5], %s283
      %s286 = sshll.u32 [#allocation14], 4
      %s287 = int_to_ptr.vmem [resolvable:$true] %s286
      %289 = dma.vmem_to_hbm [thread:$0]  %s287, 128, %s7, [#allocation5]
    $region57: #{tpu_custom_call.1} parent=1 // pred_fallthru
      _
    // Predicated region
    $region58: #{tpu_custom_call.1} parent=1 // pred_check
      _
    $region59: #{tpu_custom_call.1} parent=1 // pred_check_branch
      %291 = sbr.rel (0) target = $region61
    $region60: #{tpu_custom_call.1} parent=1 // pred_region
      %292 = dma.done [#allocation5], 128
    $region61: #{tpu_custom_call.1} parent=1 // pred_fallthru
      _
    %293 = vsyncpa [#allocation4], 1
    %294 = vsyncpa [#allocation7], 1
    %295 = vsyncpa [#allocation10], 1
    %296 = vsyncpa [#allocation13], 1
    %297 = vsyncpa [#allocation5], 1

</llo_original>
